<compile_context>
chip_gen: v6e
topology: v6e:2x2x1
jax: 0.10.0
libtpu: 0.0.40
codegen_flags: <defaults>
</compile_context>

<pallas_src>
import functools

import jax
import jax.numpy as jnp
from jax.experimental import pallas as pl
from jax.experimental.pallas import tpu as pltpu

_INV_SQRT2 = 0.7071067811865475


def _gelu_erf(x):
    """erf-based GELU matching F.gelu(approximate='none').

    erf uses the Abramowitz & Stegun 7.1.26 polynomial (|err| <= 1.5e-7); the
    reciprocal goes to the EUP (approx), everything else is VPU exp/mul/add.
    """
    z = x * _INV_SQRT2
    az = jnp.abs(z)
    t = pl.reciprocal(1.0 + 0.3275911 * az, approx=True)
    poly = t * (0.254829592 + t * (-0.284496736 + t * (1.421413741
               + t * (-1.453152027 + t * 1.061405429))))
    erf_az = 1.0 - poly * jnp.exp(-az * az)
    erf_z = jnp.where(z < 0.0, -erf_az, erf_az)
    return 0.5 * x * (1.0 + erf_z)


# ----------------------------- Pallas kernels --------------------------------


def _dsconv_gelu_kernel(p_ref, w_ref, b_ref, o_ref):
    """One depthwise-separable conv + bias + GELU stage (transposed GEMM).

    p_ref: (1, K, TM)  bf16 im2col patches, K = C*k*k, K ordered (c, a, b)
    w_ref: (C, K)      bf16 folded depthwise (x) pointwise weight
    b_ref: (C, 1)      f32 folded bias (zeros when bias=False)
    o_ref: (1, C, TM)  f32 gelu(W @ P + b); TM is lane-dense
    """
    acc = jnp.dot(w_ref[...], p_ref[0], preferred_element_type=jnp.float32)
    o_ref[0] = _gelu_erf(acc + b_ref[...]).astype(o_ref.dtype)


def _fused_tail_kernel(p_ref, w2_ref, b2_ref, w3_ref, b3_ref, o2_ref, o3_ref):
    """Two consecutive stages fused when stage B's kxk window covers stage A's
    entire output (ho_A == wo_A == k_B, so stage B's output is 1x1).

    p_ref : (1, K2, M2) bf16 patches of stage A
    w2_ref: (C, K2)     bf16 folded weight, stage A
    b2_ref: (C, 1)      f32 folded bias, stage A
    w3_ref: (C, C, M2)  f32 stage-B folded weight; last axis matches stage A's
                        flattened spatial output ordering
    b3_ref: (C, 1)      f32 folded bias, stage B
    o2_ref: (1, C, M2)  f32 stage-A output (also feeds stage B in-VMEM)
    o3_ref: (1, C, 1)   f32 stage-B output
    """
    y = _gelu_erf(jnp.dot(w2_ref[...], p_ref[0],
                          preferred_element_type=jnp.float32) + b2_ref[...])
    o2_ref[0] = y.astype(o2_ref.dtype)
    # Stage B: out[d] = sum_{c,m} w3[d,c,m] * y[c,m].  Elementwise multiply +
    # lane-axis reductions keep this tiny contraction off any relayout path.
    prod = w3_ref[...] * y[None, :, :]
    a3 = jnp.sum(jnp.sum(prod, axis=2), axis=1, keepdims=True) + b3_ref[...]
    o3_ref[0] = _gelu_erf(a3).astype(o3_ref.dtype)


# ------------------------------ stage drivers --------------------------------


def _pick_tm(n, m):
    """Lane-tile size: big tiles, but keep >=2 parallel grid steps for v7x."""
    if m > 256:
        return 256
    if n == 1 and m == 256:
        return 128
    return m


def _vmem_limit(*single_buffer_bytes):
    """Derive vmem_limit_bytes from block bytes (double-buffered) + headroom."""
    need = 2 * sum(int(b) for b in single_buffer_bytes)
    return int(min(32 * 2**20, max(8 * 2**20, 4 * need)))


def _dsconv_gelu_stage(patches, w_t, b_eff):
    """gelu(W_T @ patches + b) over a (batch, lane-tile) parallel grid."""
    n, kdim, m = patches.shape
    c_out = w_t.shape[0]
    tm = _pick_tm(n, m)
    grid = (n, pl.cdiv(m, tm))
    vmem = _vmem_limit(kdim * tm * patches.dtype.itemsize,
                       c_out * kdim * w_t.dtype.itemsize,
                       c_out * 4,
                       c_out * tm * 4)
    return pl.pallas_call(
        _dsconv_gelu_kernel,
        out_shape=jax.ShapeDtypeStruct((n, c_out, m), jnp.float32),
        grid_spec=pltpu.PrefetchScalarGridSpec(
            num_scalar_prefetch=0,
            grid=grid,
            in_specs=[
                pl.BlockSpec((1, kdim, tm), lambda i, j: (i, 0, j)),
                pl.BlockSpec((c_out, kdim), lambda i, j: (0, 0)),
                pl.BlockSpec((c_out, 1), lambda i, j: (0, 0)),
            ],
            out_specs=pl.BlockSpec((1, c_out, tm), lambda i, j: (i, 0, j)),
        ),
        compiler_params=pltpu.CompilerParams(
            dimension_semantics=("parallel", "parallel"),
            vmem_limit_bytes=vmem,
        ),
    )(patches, w_t, b_eff)


def _fused_tail_stage(patches, w2_t, b2, w3_r, b3):
    """Two chained stages in one pallas_call (intermediate stays in VMEM)."""
    n, k2, m2 = patches.shape
    c_out = w2_t.shape[0]
    vmem = _vmem_limit(k2 * m2 * patches.dtype.itemsize,
                       c_out * k2 * w2_t.dtype.itemsize,
                       c_out * 4,
                       c_out * c_out * m2 * 4,
                       c_out * 4,
                       c_out * m2 * 4,
                       c_out * 4)
    return pl.pallas_call(
        _fused_tail_kernel,
        out_shape=(jax.ShapeDtypeStruct((n, c_out, m2), jnp.float32),
                   jax.ShapeDtypeStruct((n, c_out, 1), jnp.float32)),
        grid_spec=pltpu.PrefetchScalarGridSpec(
            num_scalar_prefetch=0,
            grid=(n,),
            in_specs=[
                pl.BlockSpec((1, k2, m2), lambda i: (i, 0, 0)),
                pl.BlockSpec((c_out, k2), lambda i: (0, 0)),
                pl.BlockSpec((c_out, 1), lambda i: (0, 0)),
                pl.BlockSpec((c_out, c_out, m2), lambda i: (0, 0, 0)),
                pl.BlockSpec((c_out, 1), lambda i: (0, 0)),
            ],
            out_specs=[
                pl.BlockSpec((1, c_out, m2), lambda i: (i, 0, 0)),
                pl.BlockSpec((1, c_out, 1), lambda i: (i, 0, 0)),
            ],
        ),
        compiler_params=pltpu.CompilerParams(
            dimension_semantics=("parallel",),
            vmem_limit_bytes=vmem,
        ),
    )(patches, w2_t, b2, w3_r, b3)


# -------------------------- layout / weight folding --------------------------


def _extract_patches_t(x, k, ho, wo):
    """(N,C,H,W) -> (N, C*k*k, ho*wo); K ordered (c,a,b), M ordered (i,j)."""
    n, c = x.shape[0], x.shape[1]
    xc = x[:, :, :ho * k, :wo * k]
    xr = xc.reshape(n, c, ho, k, wo, k)                 # n c i a j b
    xt = jnp.transpose(xr, (0, 1, 3, 5, 2, 4))          # n c a b i j
    return xt.reshape(n, c * k * k, ho * wo)


def _fold_weights_t(wdw, wpw, k):
    """Fold depthwise (C,1,k,k) and pointwise (D,C,1,1) into (D, C*k*k) f32."""
    c = wdw.shape[0]
    wd = wdw[:, 0].reshape(c, k * k).astype(jnp.float32)     # [c, a*k+b]
    wp = wpw[:, :, 0, 0].astype(jnp.float32)                 # [d, c]
    w = wp[:, :, None] * wd[None, :, :]                      # [d, c, ab]
    return w.reshape(wp.shape[0], c * k * k)


def _fold_bias(wpw, b_dw, b_pw):
    """Effective post-pointwise bias: wpw @ b_dw + b_pw (zeros if absent)."""
    c_out = wpw.shape[0]
    b = jnp.zeros((c_out,), jnp.float32)
    if b_dw is not None:
        b = b + wpw[:, :, 0, 0].astype(jnp.float32) @ b_dw.astype(jnp.float32)
    if b_pw is not None:
        b = b + b_pw.astype(jnp.float32)
    return b.reshape(c_out, 1)


# --------------------------------- forward -----------------------------------


@functools.partial(jax.jit, static_argnames=("kernel_sizes", "strides"))
def global_context_extractor_forward(x, dw_weights, pw_weights,
                                     dw_biases=None, pw_biases=None,
                                     kernel_sizes=(3, 3, 5), strides=(3, 3, 5)):
    """Forward pass of GlobalContextExtractor (NCHW in, list of NCHW outs)."""
    num = len(kernel_sizes)
    if dw_biases is None:
        dw_biases = (None,) * num
    if pw_biases is None:
        pw_biases = (None,) * num

    outputs = []
    cur = x.astype(jnp.float32)
    i = 0
    while i < num:
        k, s = kernel_sizes[i], strides[i]
        # TODO(synk): stride != kernel_size or padding != 0 needs an
        # overlapping-window (halo) kernel; module defaults (k == s, pad=0)
        # are handled exactly.
        if k != s:
            raise NotImplementedError("kernel assumes stride == kernel_size")
        n, c, h, w = cur.shape
        ho, wo = (h - k) // s + 1, (w - k) // s + 1
        if ho < 1 or wo < 1:
            raise ValueError("input spatially too small for this stage")

        patches = _extract_patches_t(cur, k, ho, wo).astype(jnp.bfloat16)
        w_t = _fold_weights_t(dw_weights[i], pw_weights[i], k)
        b_eff = _fold_bias(pw_weights[i], dw_biases[i], pw_biases[i])

        # Fuse with the next stage iff its window covers this stage's whole
        # output (then its im2col is the identity on the flattened output).
        kn = kernel_sizes[i + 1] if i + 1 < num else None
        fuse = (kn is not None and kn == strides[i + 1]
                and ho == kn and wo == kn)

        if fuse:
            w3_r = _fold_weights_t(dw_weights[i + 1], pw_weights[i + 1],
                                   kn).reshape(c, c, kn * kn)
            b3 = _fold_bias(pw_weights[i + 1], dw_biases[i + 1],
                            pw_biases[i + 1])
            o2_flat, o3_flat = _fused_tail_stage(
                patches, w_t.astype(jnp.bfloat16), b_eff, w3_r, b3)
            # NOTE: reshape assumes C_out == C_in (true for this module's
            # (C,C,1,1) pointwise).
            out_a = o2_flat.reshape(n, c, ho, wo)
            out_b = o3_flat.reshape(n, c, 1, 1)
            outputs.extend([out_a, out_b])
            cur = out_b
            i += 2
        else:
            o_flat = _dsconv_gelu_stage(patches, w_t.astype(jnp.bfloat16),
                                        b_eff)
            cur = o_flat.reshape(n, c, ho, wo)       # lane-dense -> NCHW, free
            outputs.append(cur)
            i += 1
    return outputs


# ------------------------------- validation ----------------------------------


def _reference_forward(x, dw_weights, pw_weights, kernel_sizes, strides,
                       dw_biases=None, pw_biases=None):
    """Plain-JAX f32 NCHW reference mirroring the PyTorch module."""
    num = len(kernel_sizes)
    if dw_biases is None:
        dw_biases = (None,) * num
    if pw_biases is None:
        pw_biases = (None,) * num
    outs = []
    cur = x.astype(jnp.float32)
    for idx, (wdw, wpw, k, s) in enumerate(
            zip(dw_weights, pw_weights, kernel_sizes, strides)):
        n, c, h, w = cur.shape
        ho = (h - k) // s + 1
        wo = (w - k) // s + 1
        dw = jnp.zeros((n, c, ho, wo), jnp.float32)
        for a in range(k):
            for b in range(k):
                sl = cur[:, :, a:a + (ho - 1) * s + 1:s,
                         b:b + (wo - 1) * s + 1:s]
                dw = dw + sl * wdw[:, 0, a, b][None, :, None, None]
        if dw_biases[idx] is not None:
            dw = dw + dw_biases[idx][None, :, None, None]
        pw = jnp.einsum('nchw,dc->ndhw', dw, wpw[:, :, 0, 0])
        if pw_biases[idx] is not None:
            pw = pw + pw_biases[idx][None, :, None, None]
        cur = jax.nn.gelu(pw, approximate=False)
        outs.append(cur)
    return outs


if __name__ == "__main__":
    # Smallest "nice" spatial size surviving all three stride-[3,3,5] stages:
    # 48 -> 16 -> 5 -> 1.  (spatial=16 would make the 3rd conv invalid.)
    N, C, H, W = 2, 4, 48, 48
    kernel_sizes = (3, 3, 5)
    strides = (3, 3, 5)

    keys = jax.random.split(jax.random.PRNGKey(0), 1 + 2 * len(kernel_sizes))
    x = jax.random.normal(keys[0], (N, C, H, W), dtype=jnp.float32)
    dw_weights = tuple(
        0.4 * jax.random.normal(keys[1 + 2 * i], (C, 1, k, k), jnp.float32)
        for i, k in enumerate(kernel_sizes))
    pw_weights = tuple(
        0.4 * jax.random.normal(keys[2 + 2 * i], (C, C, 1, 1), jnp.float32)
        for i, _ in enumerate(kernel_sizes))

    outs = global_context_extractor_forward(
        x, dw_weights, pw_weights,
        kernel_sizes=kernel_sizes, strides=strides)
    outs = jax.block_until_ready(outs)

    refs = _reference_forward(x, dw_weights, pw_weights, kernel_sizes, strides)
    # bf16 inputs with f32 accumulation -> tolerance is set for bf16 rounding
    # (~2^-9 relative per operand, compounded over three stages).
    for o, r in zip(outs, refs):
        assert o.shape == r.shape, (o.shape, r.shape)
        err = float(jnp.max(jnp.abs(o - r)))
        assert jnp.allclose(o, r, atol=3e-2, rtol=3e-2), f"max abs err {err}"
    print("KERNEL_OK")
</pallas_src>

<mosaic_0001>
module attributes {stable_mosaic.version = 11 : i64} {
  func.func @_dsconv_gelu_kernel(%arg0: i32, %arg1: i32, %arg2: memref<1x36x256xbf16, #tpu.memory_space<vmem>>, %arg3: memref<4x36xbf16, #tpu.memory_space<vmem>>, %arg4: memref<4x1xf32, #tpu.memory_space<vmem>>, %arg5: memref<1x4x256xf32, #tpu.memory_space<vmem>>) attributes {dimension_semantics = [#tpu.dimension_semantics<parallel>, #tpu.dimension_semantics<parallel>], iteration_bounds = array<i64: 2, 1>, scalar_prefetch = 0 : i64, scratch_operands = 0 : i64, tpu.core_type = #tpu.core_type<tc>, window_params = [{transform_indices = @transform_0, window_bounds = array<i64: 1, 36, 256>}, {pipeline_mode = #tpu.pipeline_mode<synchronous>, transform_indices = @transform_1, window_bounds = array<i64: 4, 36>}, {pipeline_mode = #tpu.pipeline_mode<synchronous>, transform_indices = @transform_2, window_bounds = array<i64: 4, 1>}, {transform_indices = @transform_3, window_bounds = array<i64: 1, 4, 256>}]} {
    %c0 = arith.constant 0 : index
    %c0_0 = arith.constant 0 : index
    %0 = vector.load %arg3[%c0, %c0_0] : memref<4x36xbf16, #tpu.memory_space<vmem>>, vector<4x36xbf16>
    %c0_1 = arith.constant 0 : index
    %c0_2 = arith.constant 0 : index
    %c0_3 = arith.constant 0 : index
    %1 = vector.load %arg2[%c0_1, %c0_2, %c0_3] : memref<1x36x256xbf16, #tpu.memory_space<vmem>>, vector<1x36x256xbf16>
    %2 = vector.shape_cast %1 : vector<1x36x256xbf16> to vector<36x256xbf16>
    %cst = arith.constant dense<0.000000e+00> : vector<4x256xf32>
    %3 = tpu.matmul %0, %2, %cst {dimension_numbers = #tpu.dot_dimension_numbers<[1], [0], [0], [1], [0, 0, 1, 1], [], []>} : vector<4x36xbf16>, vector<36x256xbf16>, vector<4x256xf32> -> vector<4x256xf32>
    %c0_4 = arith.constant 0 : index
    %c0_5 = arith.constant 0 : index
    %4 = vector.load %arg4[%c0_4, %c0_5] : memref<4x1xf32, #tpu.memory_space<vmem>>, vector<4x1xf32>
    %5 = vector.broadcast %4 : vector<4x1xf32> to vector<4x256xf32>
    %6 = arith.addf %3, %5 : vector<4x256xf32>
    %cst_6 = arith.constant 0.707106769 : f32
    %7 = vector.broadcast %cst_6 : f32 to vector<4x256xf32>
    %8 = arith.mulf %6, %7 : vector<4x256xf32>
    %9 = math.absf %8 : vector<4x256xf32>
    %cst_7 = arith.constant 0.327591091 : f32
    %10 = vector.broadcast %cst_7 : f32 to vector<4x256xf32>
    %11 = arith.mulf %10, %9 : vector<4x256xf32>
    %cst_8 = arith.constant 1.000000e+00 : f32
    %12 = vector.broadcast %cst_8 : f32 to vector<4x256xf32>
    %13 = arith.addf %12, %11 : vector<4x256xf32>
    %14 = tpu.reciprocal %13 {approx = true} : vector<4x256xf32> -> vector<4x256xf32>
    %cst_9 = arith.constant 1.06140542 : f32
    %15 = vector.broadcast %cst_9 : f32 to vector<4x256xf32>
    %16 = arith.mulf %14, %15 : vector<4x256xf32>
    %cst_10 = arith.constant -1.45315206 : f32
    %17 = vector.broadcast %cst_10 : f32 to vector<4x256xf32>
    %18 = arith.addf %17, %16 : vector<4x256xf32>
    %19 = arith.mulf %14, %18 : vector<4x256xf32>
    %cst_11 = arith.constant 1.42141378 : f32
    %20 = vector.broadcast %cst_11 : f32 to vector<4x256xf32>
    %21 = arith.addf %20, %19 : vector<4x256xf32>
    %22 = arith.mulf %14, %21 : vector<4x256xf32>
    %cst_12 = arith.constant -0.284496725 : f32
    %23 = vector.broadcast %cst_12 : f32 to vector<4x256xf32>
    %24 = arith.addf %23, %22 : vector<4x256xf32>
    %25 = arith.mulf %14, %24 : vector<4x256xf32>
    %cst_13 = arith.constant 0.254829586 : f32
    %26 = vector.broadcast %cst_13 : f32 to vector<4x256xf32>
    %27 = arith.addf %26, %25 : vector<4x256xf32>
    %28 = arith.mulf %14, %27 : vector<4x256xf32>
    %cst_14 = arith.constant 0.000000e+00 : f32
    %29 = vector.broadcast %cst_14 : f32 to vector<4x256xf32>
    %30 = arith.subf %29, %9 : vector<4x256xf32>
    %31 = arith.mulf %30, %9 : vector<4x256xf32>
    %32 = math.exp %31 : vector<4x256xf32>
    %33 = arith.mulf %28, %32 : vector<4x256xf32>
    %cst_15 = arith.constant 1.000000e+00 : f32
    %34 = vector.broadcast %cst_15 : f32 to vector<4x256xf32>
    %35 = arith.subf %34, %33 : vector<4x256xf32>
    %cst_16 = arith.constant 0.000000e+00 : f32
    %36 = vector.broadcast %cst_16 : f32 to vector<4x256xf32>
    %37 = arith.cmpf olt, %8, %36 : vector<4x256xf32>
    %cst_17 = arith.constant 0.000000e+00 : f32
    %38 = vector.broadcast %cst_17 : f32 to vector<4x256xf32>
    %39 = arith.subf %38, %35 : vector<4x256xf32>
    %40 = arith.select %37, %39, %35 : vector<4x256xi1>, vector<4x256xf32>
    %cst_18 = arith.constant 5.000000e-01 : f32
    %41 = vector.broadcast %cst_18 : f32 to vector<4x256xf32>
    %42 = arith.mulf %41, %6 : vector<4x256xf32>
    %cst_19 = arith.constant 1.000000e+00 : f32
    %43 = vector.broadcast %cst_19 : f32 to vector<4x256xf32>
    %44 = arith.addf %43, %40 : vector<4x256xf32>
    %45 = arith.mulf %42, %44 : vector<4x256xf32>
    %c0_20 = arith.constant 0 : index
    %c0_21 = arith.constant 0 : index
    %c0_22 = arith.constant 0 : index
    %46 = vector.load %arg5[%c0_20, %c0_21, %c0_22] : memref<1x4x256xf32, #tpu.memory_space<vmem>>, vector<1x4x256xf32>
    %47 = vector.shape_cast %46 : vector<1x4x256xf32> to vector<4x256xf32>
    %48 = vector.shape_cast %45 : vector<4x256xf32> to vector<1x4x256xf32>
    tpu.vector_store %arg5[%c0_20, %c0_21, %c0_22], %48 {strides = array<i32>} : memref<1x4x256xf32, #tpu.memory_space<vmem>>, vector<1x4x256xf32>,
    return
  }
  func.func @transform_0(%arg0: i32, %arg1: i32) -> (i32, i32, i32) {
    %c0_i32 = arith.constant 0 : i32
    %c0_i32_0 = arith.constant 0 : i32
    return %arg0, %c0_i32, %arg1 : i32, i32, i32
  }
  func.func @transform_1(%arg0: i32, %arg1: i32) -> (i32, i32) {
    %c0_i32 = arith.constant 0 : i32
    %c0_i32_0 = arith.constant 0 : i32
    %c0_i32_1 = arith.constant 0 : i32
    return %c0_i32, %c0_i32_0 : i32, i32
  }
  func.func @transform_2(%arg0: i32, %arg1: i32) -> (i32, i32) {
    %c0_i32 = arith.constant 0 : i32
    %c0_i32_0 = arith.constant 0 : i32
    %c0_i32_1 = arith.constant 0 : i32
    return %c0_i32, %c0_i32_0 : i32, i32
  }
  func.func @transform_3(%arg0: i32, %arg1: i32) -> (i32, i32, i32) {
    %c0_i32 = arith.constant 0 : i32
    %c0_i32_0 = arith.constant 0 : i32
    return %arg0, %c0_i32, %arg1 : i32, i32, i32
  }
}

module attributes {stable_mosaic.version = 11 : i64} {
  func.func @_fused_tail_kernel(%arg0: i32, %arg1: memref<1x36x25xbf16, #tpu.memory_space<vmem>>, %arg2: memref<4x36xbf16, #tpu.memory_space<vmem>>, %arg3: memref<4x1xf32, #tpu.memory_space<vmem>>, %arg4: memref<4x4x25xf32, #tpu.memory_space<vmem>>, %arg5: memref<4x1xf32, #tpu.memory_space<vmem>>, %arg6: memref<1x4x25xf32, #tpu.memory_space<vmem>>, %arg7: memref<1x4x1xf32, #tpu.memory_space<vmem>>) attributes {dimension_semantics = [#tpu.dimension_semantics<parallel>], iteration_bounds = array<i64: 2>, scalar_prefetch = 0 : i64, scratch_operands = 0 : i64, tpu.core_type = #tpu.core_type<tc>, window_params = [{transform_indices = @transform_0, window_bounds = array<i64: 1, 36, 25>}, {pipeline_mode = #tpu.pipeline_mode<synchronous>, transform_indices = @transform_1, window_bounds = array<i64: 4, 36>}, {pipeline_mode = #tpu.pipeline_mode<synchronous>, transform_indices = @transform_2, window_bounds = array<i64: 4, 1>}, {pipeline_mode = #tpu.pipeline_mode<synchronous>, transform_indices = @transform_3, window_bounds = array<i64: 4, 4, 25>}, {pipeline_mode = #tpu.pipeline_mode<synchronous>, transform_indices = @transform_4, window_bounds = array<i64: 4, 1>}, {transform_indices = @transform_5, window_bounds = array<i64: 1, 4, 25>}, {transform_indices = @transform_6, window_bounds = array<i64: 1, 4, 1>}]} {
    %c0 = arith.constant 0 : index
    %c0_0 = arith.constant 0 : index
    %0 = vector.load %arg2[%c0, %c0_0] : memref<4x36xbf16, #tpu.memory_space<vmem>>, vector<4x36xbf16>
    %c0_1 = arith.constant 0 : index
    %c0_2 = arith.constant 0 : index
    %c0_3 = arith.constant 0 : index
    %1 = vector.load %arg1[%c0_1, %c0_2, %c0_3] : memref<1x36x25xbf16, #tpu.memory_space<vmem>>, vector<1x36x25xbf16>
    %2 = vector.shape_cast %1 : vector<1x36x25xbf16> to vector<36x25xbf16>
    %cst = arith.constant dense<0.000000e+00> : vector<4x25xf32>
    %3 = tpu.matmul %0, %2, %cst {dimension_numbers = #tpu.dot_dimension_numbers<[1], [0], [0], [1], [0, 0, 1, 1], [], []>} : vector<4x36xbf16>, vector<36x25xbf16>, vector<4x25xf32> -> vector<4x25xf32>
    %c0_4 = arith.constant 0 : index
    %c0_5 = arith.constant 0 : index
    %4 = vector.load %arg3[%c0_4, %c0_5] : memref<4x1xf32, #tpu.memory_space<vmem>>, vector<4x1xf32>
    %5 = vector.broadcast %4 : vector<4x1xf32> to vector<4x25xf32>
    %6 = arith.addf %3, %5 : vector<4x25xf32>
    %cst_6 = arith.constant 0.707106769 : f32
    %7 = vector.broadcast %cst_6 : f32 to vector<4x25xf32>
    %8 = arith.mulf %6, %7 : vector<4x25xf32>
    %9 = math.absf %8 : vector<4x25xf32>
    %cst_7 = arith.constant 0.327591091 : f32
    %10 = vector.broadcast %cst_7 : f32 to vector<4x25xf32>
    %11 = arith.mulf %10, %9 : vector<4x25xf32>
    %cst_8 = arith.constant 1.000000e+00 : f32
    %12 = vector.broadcast %cst_8 : f32 to vector<4x25xf32>
    %13 = arith.addf %12, %11 : vector<4x25xf32>
    %14 = tpu.reciprocal %13 {approx = true} : vector<4x25xf32> -> vector<4x25xf32>
    %cst_9 = arith.constant 1.06140542 : f32
    %15 = vector.broadcast %cst_9 : f32 to vector<4x25xf32>
    %16 = arith.mulf %14, %15 : vector<4x25xf32>
    %cst_10 = arith.constant -1.45315206 : f32
    %17 = vector.broadcast %cst_10 : f32 to vector<4x25xf32>
    %18 = arith.addf %17, %16 : vector<4x25xf32>
    %19 = arith.mulf %14, %18 : vector<4x25xf32>
    %cst_11 = arith.constant 1.42141378 : f32
    %20 = vector.broadcast %cst_11 : f32 to vector<4x25xf32>
    %21 = arith.addf %20, %19 : vector<4x25xf32>
    %22 = arith.mulf %14, %21 : vector<4x25xf32>
    %cst_12 = arith.constant -0.284496725 : f32
    %23 = vector.broadcast %cst_12 : f32 to vector<4x25xf32>
    %24 = arith.addf %23, %22 : vector<4x25xf32>
    %25 = arith.mulf %14, %24 : vector<4x25xf32>
    %cst_13 = arith.constant 0.254829586 : f32
    %26 = vector.broadcast %cst_13 : f32 to vector<4x25xf32>
    %27 = arith.addf %26, %25 : vector<4x25xf32>
    %28 = arith.mulf %14, %27 : vector<4x25xf32>
    %cst_14 = arith.constant 0.000000e+00 : f32
    %29 = vector.broadcast %cst_14 : f32 to vector<4x25xf32>
    %30 = arith.subf %29, %9 : vector<4x25xf32>
    %31 = arith.mulf %30, %9 : vector<4x25xf32>
    %32 = math.exp %31 : vector<4x25xf32>
    %33 = arith.mulf %28, %32 : vector<4x25xf32>
    %cst_15 = arith.constant 1.000000e+00 : f32
    %34 = vector.broadcast %cst_15 : f32 to vector<4x25xf32>
    %35 = arith.subf %34, %33 : vector<4x25xf32>
    %cst_16 = arith.constant 0.000000e+00 : f32
    %36 = vector.broadcast %cst_16 : f32 to vector<4x25xf32>
    %37 = arith.cmpf olt, %8, %36 : vector<4x25xf32>
    %cst_17 = arith.constant 0.000000e+00 : f32
    %38 = vector.broadcast %cst_17 : f32 to vector<4x25xf32>
    %39 = arith.subf %38, %35 : vector<4x25xf32>
    %40 = arith.select %37, %39, %35 : vector<4x25xi1>, vector<4x25xf32>
    %cst_18 = arith.constant 5.000000e-01 : f32
    %41 = vector.broadcast %cst_18 : f32 to vector<4x25xf32>
    %42 = arith.mulf %41, %6 : vector<4x25xf32>
    %cst_19 = arith.constant 1.000000e+00 : f32
    %43 = vector.broadcast %cst_19 : f32 to vector<4x25xf32>
    %44 = arith.addf %43, %40 : vector<4x25xf32>
    %45 = arith.mulf %42, %44 : vector<4x25xf32>
    %c0_20 = arith.constant 0 : index
    %c0_21 = arith.constant 0 : index
    %c0_22 = arith.constant 0 : index
    %46 = vector.load %arg6[%c0_20, %c0_21, %c0_22] : memref<1x4x25xf32, #tpu.memory_space<vmem>>, vector<1x4x25xf32>
    %47 = vector.shape_cast %46 : vector<1x4x25xf32> to vector<4x25xf32>
    %48 = vector.shape_cast %45 : vector<4x25xf32> to vector<1x4x25xf32>
    tpu.vector_store %arg6[%c0_20, %c0_21, %c0_22], %48 {strides = array<i32>} : memref<1x4x25xf32, #tpu.memory_space<vmem>>, vector<1x4x25xf32>,
    %c0_23 = arith.constant 0 : index
    %c0_24 = arith.constant 0 : index
    %c0_25 = arith.constant 0 : index
    %49 = vector.load %arg4[%c0_23, %c0_24, %c0_25] : memref<4x4x25xf32, #tpu.memory_space<vmem>>, vector<4x4x25xf32>
    %50 = vector.shape_cast %45 : vector<4x25xf32> to vector<1x4x25xf32>
    %51 = vector.broadcast %50 : vector<1x4x25xf32> to vector<4x4x25xf32>
    %52 = arith.mulf %49, %51 : vector<4x4x25xf32>
    %cst_26 = arith.constant dense<0.000000e+00> : vector<4x4xf32>
    %53 = vector.multi_reduction <add>, %52, %cst_26 [2] : vector<4x4x25xf32> to vector<4x4xf32>
    %cst_27 = arith.constant dense<0.000000e+00> : vector<4xf32>
    %54 = vector.multi_reduction <add>, %53, %cst_27 [1] : vector<4x4xf32> to vector<4xf32>
    %55 = vector.shape_cast %54 : vector<4xf32> to vector<4x1xf32>
    %c0_28 = arith.constant 0 : index
    %c0_29 = arith.constant 0 : index
    %56 = vector.load %arg5[%c0_28, %c0_29] : memref<4x1xf32, #tpu.memory_space<vmem>>, vector<4x1xf32>
    %57 = arith.addf %55, %56 : vector<4x1xf32>
    %cst_30 = arith.constant 0.707106769 : f32
    %58 = vector.broadcast %cst_30 : f32 to vector<4x1xf32>
    %59 = arith.mulf %57, %58 : vector<4x1xf32>
    %60 = math.absf %59 : vector<4x1xf32>
    %cst_31 = arith.constant 0.327591091 : f32
    %61 = vector.broadcast %cst_31 : f32 to vector<4x1xf32>
    %62 = arith.mulf %61, %60 : vector<4x1xf32>
    %cst_32 = arith.constant 1.000000e+00 : f32
    %63 = vector.broadcast %cst_32 : f32 to vector<4x1xf32>
    %64 = arith.addf %63, %62 : vector<4x1xf32>
    %65 = tpu.reciprocal %64 {approx = true} : vector<4x1xf32> -> vector<4x1xf32>
    %cst_33 = arith.constant 1.06140542 : f32
    %66 = vector.broadcast %cst_33 : f32 to vector<4x1xf32>
    %67 = arith.mulf %65, %66 : vector<4x1xf32>
    %cst_34 = arith.constant -1.45315206 : f32
    %68 = vector.broadcast %cst_34 : f32 to vector<4x1xf32>
    %69 = arith.addf %68, %67 : vector<4x1xf32>
    %70 = arith.mulf %65, %69 : vector<4x1xf32>
    %cst_35 = arith.constant 1.42141378 : f32
    %71 = vector.broadcast %cst_35 : f32 to vector<4x1xf32>
    %72 = arith.addf %71, %70 : vector<4x1xf32>
    %73 = arith.mulf %65, %72 : vector<4x1xf32>
    %cst_36 = arith.constant -0.284496725 : f32
    %74 = vector.broadcast %cst_36 : f32 to vector<4x1xf32>
    %75 = arith.addf %74, %73 : vector<4x1xf32>
    %76 = arith.mulf %65, %75 : vector<4x1xf32>
    %cst_37 = arith.constant 0.254829586 : f32
    %77 = vector.broadcast %cst_37 : f32 to vector<4x1xf32>
    %78 = arith.addf %77, %76 : vector<4x1xf32>
    %79 = arith.mulf %65, %78 : vector<4x1xf32>
    %cst_38 = arith.constant 0.000000e+00 : f32
    %80 = vector.broadcast %cst_38 : f32 to vector<4x1xf32>
    %81 = arith.subf %80, %60 : vector<4x1xf32>
    %82 = arith.mulf %81, %60 : vector<4x1xf32>
    %83 = math.exp %82 : vector<4x1xf32>
    %84 = arith.mulf %79, %83 : vector<4x1xf32>
    %cst_39 = arith.constant 1.000000e+00 : f32
    %85 = vector.broadcast %cst_39 : f32 to vector<4x1xf32>
    %86 = arith.subf %85, %84 : vector<4x1xf32>
    %cst_40 = arith.constant 0.000000e+00 : f32
    %87 = vector.broadcast %cst_40 : f32 to vector<4x1xf32>
    %88 = arith.cmpf olt, %59, %87 : vector<4x1xf32>
    %cst_41 = arith.constant 0.000000e+00 : f32
    %89 = vector.broadcast %cst_41 : f32 to vector<4x1xf32>
    %90 = arith.subf %89, %86 : vector<4x1xf32>
    %91 = arith.select %88, %90, %86 : vector<4x1xi1>, vector<4x1xf32>
    %cst_42 = arith.constant 5.000000e-01 : f32
    %92 = vector.broadcast %cst_42 : f32 to vector<4x1xf32>
    %93 = arith.mulf %92, %57 : vector<4x1xf32>
    %cst_43 = arith.constant 1.000000e+00 : f32
    %94 = vector.broadcast %cst_43 : f32 to vector<4x1xf32>
    %95 = arith.addf %94, %91 : vector<4x1xf32>
    %96 = arith.mulf %93, %95 : vector<4x1xf32>
    %c0_44 = arith.constant 0 : index
    %c0_45 = arith.constant 0 : index
    %c0_46 = arith.constant 0 : index
    %97 = vector.load %arg7[%c0_44, %c0_45, %c0_46] : memref<1x4x1xf32, #tpu.memory_space<vmem>>, vector<1x4x1xf32>
    %98 = vector.shape_cast %97 : vector<1x4x1xf32> to vector<4x1xf32>
    %99 = vector.shape_cast %96 : vector<4x1xf32> to vector<1x4x1xf32>
    tpu.vector_store %arg7[%c0_44, %c0_45, %c0_46], %99 {strides = array<i32>} : memref<1x4x1xf32, #tpu.memory_space<vmem>>, vector<1x4x1xf32>,
    return
  }
  func.func @transform_0(%arg0: i32) -> (i32, i32, i32) {
    %c0_i32 = arith.constant 0 : i32
    %c0_i32_0 = arith.constant 0 : i32
    %c0_i32_1 = arith.constant 0 : i32
    return %arg0, %c0_i32, %c0_i32_0 : i32, i32, i32
  }
  func.func @transform_1(%arg0: i32) -> (i32, i32) {
    %c0_i32 = arith.constant 0 : i32
    %c0_i32_0 = arith.constant 0 : i32
    %c0_i32_1 = arith.constant 0 : i32
    return %c0_i32, %c0_i32_0 : i32, i32
  }
  func.func @transform_2(%arg0: i32) -> (i32, i32) {
    %c0_i32 = arith.constant 0 : i32
    %c0_i32_0 = arith.constant 0 : i32
    %c0_i32_1 = arith.constant 0 : i32
    return %c0_i32, %c0_i32_0 : i32, i32
  }
  func.func @transform_3(%arg0: i32) -> (i32, i32, i32) {
    %c0_i32 = arith.constant 0 : i32
    %c0_i32_0 = arith.constant 0 : i32
    %c0_i32_1 = arith.constant 0 : i32
    %c0_i32_2 = arith.constant 0 : i32
    return %c0_i32, %c0_i32_0, %c0_i32_1 : i32, i32, i32
  }
  func.func @transform_4(%arg0: i32) -> (i32, i32) {
    %c0_i32 = arith.constant 0 : i32
    %c0_i32_0 = arith.constant 0 : i32
    %c0_i32_1 = arith.constant 0 : i32
    return %c0_i32, %c0_i32_0 : i32, i32
  }
  func.func @transform_5(%arg0: i32) -> (i32, i32, i32) {
    %c0_i32 = arith.constant 0 : i32
    %c0_i32_0 = arith.constant 0 : i32
    %c0_i32_1 = arith.constant 0 : i32
    return %arg0, %c0_i32, %c0_i32_0 : i32, i32, i32
  }
  func.func @transform_6(%arg0: i32) -> (i32, i32, i32) {
    %c0_i32 = arith.constant 0 : i32
    %c0_i32_0 = arith.constant 0 : i32
    %c0_i32_1 = arith.constant 0 : i32
    return %arg0, %c0_i32, %c0_i32_0 : i32, i32, i32
  }
}

</mosaic_0001>

<llo_original>
// kernel: global_context_extractor_forward.2
$region0: #{global_context_extractor_forward.2}
  #allocation0 [shape = 'u32[]', space=smem, size = 0x4, offset = 0x4, fixed_abs, tag = 'smem constant byte address 0x4 - core index']
  #allocation1 [shape = 'u32[144,128]{1,0:T(1,128)}', space=vmem, size = 0x12000, scoped, tag = 'internal scratch']
  %s0 = inlined_call_operand.vmem [shape: bf16[2,36,256], index: 0, kind: input, shape index: {}]
  %s1 = inlined_call_operand.vmem [shape: bf16[4,36], index: 1, kind: input, shape index: {}]
  %s2 = inlined_call_operand.vmem [shape: f32[4,1], index: 2, kind: input, shape index: {}]
  %s3 = inlined_call_operand.vmem [shape: f32[2,4,256], index: 3, kind: output, shape index: {}]
  %s4 = sld [smem:[#allocation0]]
  $region45: #{global_context_extractor_forward.2} parent=0
    _
  %s6 = ssub.s32 1, %s4
  %s7 = scalar_select 0, %s6, %s4
  loop: start=0, step=1, limit=4
  $region2: #{global_context_extractor_forward.2} parent=0 // loop_pre_header
    _
  $region3: #{global_context_extractor_forward.2} parent=0 // loop_header
    %s9 = sphi 0, %s13
    %p10 = scmp.ge.s32.totalorder %s9, 4
    %s16 = sphi 0, %s28
    %s17 = sphi 0, %s24
    %s18 = sphi 0, %s16
    %s19 = sphi 0, %s17
    %s20 = sphi 0, %s18
    %s21 = sphi 0, %s19
    %s33 = sphi 0, %s35
    %s36 = sphi 0, %s33
    %s37 = sphi 0, %s36
    %s53 = sphi 0, %s37
    %s57 = sphi 0, %s57
    %s59 = sphi 0, %s57
    %s60 = sphi 0, %s59
    %s74 = sphi 0, %s60
    %s78 = sphi 0, %s78
    %s80 = sphi 0, %s78
    %s81 = sphi 0, %s80
    %s95 = sphi 0, %s81
    %s103 = sphi 0, %s105
    %s106 = sphi 0, %s103
    %s107 = sphi 0, %s106
    %s123 = sphi 0, %s107
  $region4: #{global_context_extractor_forward.2} parent=0 // loop_header_branch
    %12 = sbr.rel (%p10) target = $region8
  $region5: #{global_context_extractor_forward.2} parent=0 // loop_body
    %s14 = ssub.s32 %s9, 1
    %s15 = ssub.s32 %s9, 2
    %s22 = sadd.s32 1, %s17
    %p23 = scmp.ge.s32.totalorder %s22, 1
    %s24 = scalar_select %p23, 0, %s22
    %s25 = sadd.s32 1, %s16
    %s26 = scalar_select %p23, %s25, %s16
    %p27 = scmp.ge.s32.totalorder %s26, 2
    %s28 = scalar_select %p27, 0, %s26
    %s29 = ssub.s32 %s16, %s28
    %s30 = ssub.s32 %s17, %s24
    %s31 = sor.u32 %s29, %s30
    %p32 = scmp.eq.s32.totalorder %s31, 0
    %s34 = sadd.s32 %s33, 1
    %s35 = scalar_select %p32, %s33, %s34
    %p38 = pneg %p32
    %p39 = scmp.eq.s32.totalorder %s9, 1
    %p40 = por %p38, %p39
    %p41 = scmp.ne.s32.totalorder %s33, %s36
    %p42 = scmp.eq.s32.totalorder %s9, 0
    %p43 = por %p41, %p42
    %p44 = scmp.ne.s32.totalorder %s33, %s36
    %p45 = scmp.eq.s32.totalorder %s14, 1
    %p46 = por %p44, %p45
    %p47 = scmp.ne.s32.totalorder %s36, %s37
    %p48 = scmp.eq.s32.totalorder %s14, 0
    %p49 = por %p47, %p48
    %p50 = scmp.ne.s32.totalorder %s36, %s37
    %p51 = scmp.eq.s32.totalorder %s15, 1
    %p52 = por %p50, %p51
    %p54 = scmp.ne.s32.totalorder %s37, %s53
    %p55 = scmp.eq.s32.totalorder %s15, 0
    %p56 = por %p54, %p55
    %s58 = sadd.s32 %s57, 1
    %p61 = scmp.eq.s32.totalorder %s9, 1
    %p62 = scmp.ne.s32.totalorder %s57, %s59
    %p63 = scmp.eq.s32.totalorder %s9, 0
    %p64 = por %p62, %p63
    %p65 = scmp.ne.s32.totalorder %s57, %s59
    %p66 = scmp.eq.s32.totalorder %s14, 1
    %p67 = por %p65, %p66
    %p68 = scmp.ne.s32.totalorder %s59, %s60
    %p69 = scmp.eq.s32.totalorder %s14, 0
    %p70 = por %p68, %p69
    %p71 = scmp.ne.s32.totalorder %s59, %s60
    %p72 = scmp.eq.s32.totalorder %s15, 1
    %p73 = por %p71, %p72
    %p75 = scmp.ne.s32.totalorder %s60, %s74
    %p76 = scmp.eq.s32.totalorder %s15, 0
    %p77 = por %p75, %p76
    %s79 = sadd.s32 %s78, 1
    %p82 = scmp.eq.s32.totalorder %s9, 1
    %p83 = scmp.ne.s32.totalorder %s78, %s80
    %p84 = scmp.eq.s32.totalorder %s9, 0
    %p85 = por %p83, %p84
    %p86 = scmp.ne.s32.totalorder %s78, %s80
    %p87 = scmp.eq.s32.totalorder %s14, 1
    %p88 = por %p86, %p87
    %p89 = scmp.ne.s32.totalorder %s80, %s81
    %p90 = scmp.eq.s32.totalorder %s14, 0
    %p91 = por %p89, %p90
    %p92 = scmp.ne.s32.totalorder %s80, %s81
    %p93 = scmp.eq.s32.totalorder %s15, 1
    %p94 = por %p92, %p93
    %p96 = scmp.ne.s32.totalorder %s81, %s95
    %p97 = scmp.eq.s32.totalorder %s15, 0
    %p98 = por %p96, %p97
    %s99 = ssub.s32 %s16, %s28
    %s100 = ssub.s32 %s17, %s24
    %s101 = sor.u32 %s99, %s100
    %p102 = scmp.eq.s32.totalorder %s101, 0
    %s104 = sadd.s32 %s103, 1
    %s105 = scalar_select %p102, %s103, %s104
    %p108 = pneg %p102
    %p109 = scmp.eq.s32.totalorder %s9, 1
    %p110 = por %p108, %p109
    %p111 = scmp.ne.s32.totalorder %s103, %s106
    %p112 = scmp.eq.s32.totalorder %s9, 0
    %p113 = por %p111, %p112
    %p114 = scmp.ne.s32.totalorder %s103, %s106
    %p115 = scmp.eq.s32.totalorder %s14, 1
    %p116 = por %p114, %p115
    %p117 = scmp.ne.s32.totalorder %s106, %s107
    %p118 = scmp.eq.s32.totalorder %s14, 0
    %p119 = por %p117, %p118
    %p120 = scmp.ne.s32.totalorder %s106, %s107
    %p121 = scmp.eq.s32.totalorder %s15, 1
    %p122 = por %p120, %p121
    %p124 = scmp.ne.s32.totalorder %s107, %s123
    %p125 = scmp.eq.s32.totalorder %s15, 0
    %p126 = por %p124, %p125
    %p127 = scmp.le.s32.totalorder 1, %s9
    %p128 = scmp.lt.s32.totalorder %s9, 3
    %p129 = pnand %p127, %p128
    %p130 = pneg %p129
    // Predicated region
    $region9: #{global_context_extractor_forward.2} parent=5 // pred_check
      _
    $region10: #{global_context_extractor_forward.2} parent=5 // pred_check_branch
      %132 = sbr.rel (%p129) target = $region12
    $region11: #{global_context_extractor_forward.2} parent=5 // pred_region
      %s133 = ssub.s32 %s9, 1
      // Predicated region
      $region13: #{global_context_extractor_forward.2} parent=11 // pred_check
        %p134 = pneg %p70
      $region14: #{global_context_extractor_forward.2} parent=11 // pred_check_branch
        %136 = sbr.rel (%p134) target = $region16
      $region15: #{global_context_extractor_forward.2} parent=11 // pred_region
        _
      $region16: #{global_context_extractor_forward.2} parent=11 // pred_fallthru
        _
      // Predicated region
      $region17: #{global_context_extractor_forward.2} parent=11 // pred_check
        %p137 = pneg %p91
      $region18: #{global_context_extractor_forward.2} parent=11 // pred_check_branch
        %139 = sbr.rel (%p137) target = $region20
      $region19: #{global_context_extractor_forward.2} parent=11 // pred_region
        _
      $region20: #{global_context_extractor_forward.2} parent=11 // pred_fallthru
        _
    $region12: #{global_context_extractor_forward.2} parent=5 // pred_fallthru
      _
    %p140 = scmp.lt.s32.totalorder %s9, 2
    // Predicated region
    $region21: #{global_context_extractor_forward.2} parent=5 // pred_check
      %p141 = pneg %p140
    $region22: #{global_context_extractor_forward.2} parent=5 // pred_check_branch
      %143 = sbr.rel (%p141) target = $region24
    $region23: #{global_context_extractor_forward.2} parent=5 // pred_region
      // Predicated region
      $region25: #{global_context_extractor_forward.2} parent=23 // pred_check
        %p144 = pneg %p43
      $region26: #{global_context_extractor_forward.2} parent=23 // pred_check_branch
        %146 = sbr.rel (%p144) target = $region28
      $region27: #{global_context_extractor_forward.2} parent=23 // pred_region
        %s147 = smul.u32 2, %s17
        %p148 = scmp.lt.s32.totalorder %s16, 1
        %s149 = scalar_select %p148, %s16, 1
        %p150 = scmp.lt.s32.totalorder %s147, 1
        %s151 = scalar_select %p150, %s147, 1
        %s152 = smul.addr %s149, 10
        %s153 = sadd.s32 %s151, %s152
        %s154 = smul.addr %s153, 4
        %s155 = scalar_lea.vmem %s0, %s154
        %s156 = smul.u32 2, %s17
      $region28: #{global_context_extractor_forward.2} parent=23 // pred_fallthru
        _
    $region24: #{global_context_extractor_forward.2} parent=5 // pred_fallthru
      _
    %p157 = scmp.le.s32.totalorder 1, %s9
    %p158 = scmp.lt.s32.totalorder %s9, 3
    %p159 = pnand %p157, %p158
    %p160 = pneg %p159
    // Predicated region
    $region29: #{global_context_extractor_forward.2} parent=5 // pred_check
      _
    $region30: #{global_context_extractor_forward.2} parent=5 // pred_check_branch
      %162 = sbr.rel (%p159) target = $region32
    $region31: #{global_context_extractor_forward.2} parent=5 // pred_region
      %s163 = ssub.s32 %s9, 1
      %s164 = smul.u32 2, %s19
      %p165 = scmp.lt.s32.totalorder %s18, 1
      %s166 = scalar_select %p165, %s18, 1
      %p167 = scmp.lt.s32.totalorder %s164, 1
      %s168 = scalar_select %p167, %s164, 1
      %s169 = smul.addr %s166, 10
      %s170 = sadd.s32 %s168, %s169
      %s171 = smul.addr %s170, 4
      %s172 = scalar_lea.vmem %s0, %s171
      %p173 = pneg %p49
      %p174 = pneg %p46
      %p175 = pneg %p70
      %p176 = pneg %p67
      %p177 = pneg %p91
      %p178 = pneg %p88
      %p179 = pneg %p119
      %p180 = pneg %p116
      %s181 = smul.u32 2, %s19
      %p182 = scmp.lt.s32.totalorder %s18, 1
      %s183 = scalar_select %p182, %s18, 1
      %p184 = scmp.lt.s32.totalorder %s181, 1
      %s185 = scalar_select %p184, %s181, 1
      %s186 = smul.addr %s183, 2
      %s187 = sadd.s32 %s185, %s186
      %s188 = smul.addr %s187, 4
      %s189 = scalar_lea.vmem %s3, %s188
      %s190 = smul.u32 2, %s19
      %p191 = scmp.lt.s32.totalorder %s18, 1
      %s192 = scalar_select %p191, %s18, 1
      %p193 = scmp.lt.s32.totalorder %s190, 1
      %s194 = scalar_select %p193, %s190, 1
      %s195 = smul.addr %s192, 10
      %s196 = sadd.s32 %s194, %s195
      %s197 = smul.addr %s196, 4
      %s198 = scalar_lea.vmem %s0, %s197
      %s199 = smul.u32 2, %s19
      %s200 = smul.u32 2, %s19
      %p201 = scmp.lt.s32.totalorder %s18, 1
      %s202 = scalar_select %p201, %s18, 1
      %p203 = scmp.lt.s32.totalorder %s200, 1
      %s204 = scalar_select %p203, %s200, 1
      %s205 = smul.addr %s202, 2
      %s206 = sadd.s32 %s204, %s205
      %s207 = smul.addr %s206, 4
      %s208 = scalar_lea.vmem %s3, %s207
      %s209 = smul.u32 2, %s19
      %v211 = vld [vmem:[%s1] sm:$0x3]
      %v212 = vld [vmem:[%s198] sm:$0xff]
      %v213 = vld [vmem:[%s198 + $0x8] sm:$0xff]
      %v214 = vld [vmem:[%s198 + $0x10] sm:$0xff]
      %v215 = vld [vmem:[%s198 + $0x18] sm:$0xff]
      %v216 = vld [vmem:[%s198 + $0x20] sm:$0x33]
      %v217 = vld [vmem:[%s2] sm:$0xf]
      %219 = vset.pattern.permute.xlu0 0
      %220 = vperm.xlu0 %219, %v217
      %v221 = vpop.permute.xlu0 %220
      %v228 = vunpack.c.l.b16 %v212
      %v229 = vunpack.c.h.b16 %v212
      %v230 = vunpack.c.l.b16 %v213
      %v231 = vunpack.c.h.b16 %v213
      %v232 = vunpack.c.l.b16 %v214
      %v233 = vunpack.c.h.b16 %v214
      %v234 = vunpack.c.l.b16 %v215
      %v235 = vunpack.c.h.b16 %v215
      %v236 = vunpack.c.l.b16 %v216
      %v237 = vunpack.c.h.b16 %v216
      %v238 = vpack.c.b16 %v230, %v228
      %v239 = vpack.c.b16 %v231, %v229
      %v240 = vpack.c.b16 %v234, %v232
      %v241 = vpack.c.b16 %v235, %v233
      %v242 = vpack.c.b16 %v236, %v236
      %v243 = vpack.c.b16 %v237, %v237
      %vm248 = vcmask 293888
      %v250 = vsel %vm248, %v211, 0
      %vm252 = vcmask 1041408
      %v254 = vsel %vm252, %v242, 0
      %v257 = vsel %vm252, %v243, 0
      %259 = vmatprep.subr.bf16.mxu0 0
      %260 = vmatpush1.bf16.msra.mxu0 0
      %261 = vmatprep.subr.bf16.mxu0 0
      %262 = vmatpush1.bf16.msra.mxu0 0
      %263 = vmatprep.subr.bf16.mxu0 0
      %264 = vmatpush1.bf16.msra.mxu0 0
      %265 = vmatprep.subr.bf16.mxu0 0
      %266 = vmatpush1.bf16.msra.mxu0 0
      %267 = vmatprep.subr.bf16.mxu0 0
      %268 = vmatpush1.bf16.msra.mxu0 0
      %269 = vmatprep.subr.bf16.mxu0 %v257
      %270 = vmatpush1.bf16.msra.mxu0 %v254
      %271 = vmatprep.subr.bf16.mxu0 %v241
      %272 = vmatpush1.bf16.msra.mxu0 %v240
      %273 = vmatprep.subr.bf16.mxu0 %v239
      %274 = vmatpush1.bf16.msra.mxu0 %v238
      %275 = vmatprep.subr.bf16.mxu0 0
      %276 = vmatpush2.bf16.msra.mxu0 0
      %277 = vmatprep.subr.bf16.mxu0 0
      %278 = vmatpush2.bf16.msra.mxu0 0
      %279 = vmatprep.subr.bf16.mxu0 0
      %280 = vmatpush2.bf16.msra.mxu0 0
      %281 = vmatprep.subr.bf16.mxu0 0
      %282 = vmatpush2.bf16.msra.mxu0 0
      %283 = vmatprep.subr.bf16.mxu0 0
      %284 = vmatpush2.bf16.msra.mxu0 0
      %285 = vmatprep.subr.bf16.mxu0 0
      %286 = vmatpush2.bf16.msra.mxu0 0
      %287 = vmatprep.subr.bf16.mxu0 0
      %288 = vmatpush2.bf16.msra.mxu0 0
      %289 = vmatprep.subr.bf16.mxu0 0
      %290 = vmatpush2.bf16.msra.mxu0 0
      %291 = vmatprep.mubr.bf16.mxu0 0
      %292 = vmatmul.mubr.bf16.gmra.mxu0 %v250
      %v293 = vpop.f32.mrf.mxu0
      %v294 = vadd.f32 %v221, %v293
      %v295 = vpop.f32.mrf.mxu0
      %v296 = vadd.f32 %v221, %v295
      %v297 = vpop.f32.mrf.mxu0
      %v298 = vpop.f32.mrf.mxu0
      %299 = vdwg.mxu0
      %v300 = vmul.f32 %v294, 0.70710677
      %v301 = vmul.f32 %v296, 0.70710677
      %v302 = vand.u32 2147483647, %v300
      %v303 = vand.u32 2147483647, %v301
      %v304 = vmul.f32 %v302, 0.3275911
      %v305 = vmul.f32 %v303, 0.3275911
      %v306 = vadd.f32 %v304, 1.0
      %v307 = vadd.f32 %v305, 1.0
      %v308 = vrcp.pop %v306
      %v309 = vrcp.pop %v307
      %v310 = vmul.f32 %v308, 1.0614054
      %v311 = vmul.f32 %v309, 1.0614054
      %v312 = vadd.f32 %v310, -1.4531521
      %v313 = vadd.f32 %v311, -1.4531521
      %v314 = vmul.f32 %v308, %v312
      %v315 = vmul.f32 %v309, %v313
      %v316 = vadd.f32 %v314, 1.4214138
      %v317 = vadd.f32 %v315, 1.4214138
      %v318 = vmul.f32 %v308, %v316
      %v319 = vmul.f32 %v309, %v317
      %v320 = vadd.f32 %v318, -0.28449672
      %v321 = vadd.f32 %v319, -0.28449672
      %v322 = vmul.f32 %v308, %v320
      %v323 = vmul.f32 %v309, %v321
      %v324 = vadd.f32 %v322, 0.2548296
      %v325 = vadd.f32 %v323, 0.2548296
      %v326 = vmul.f32 %v308, %v324
      %v327 = vmul.f32 %v309, %v325
      %v328 = vsub.f32 0.0, %v302
      %v329 = vsub.f32 0.0, %v303
      %v330 = vmul.f32 %v328, %v302
      %v331 = vmul.f32 %v329, %v303
      %v332 = vmul.f32 %v330, 1.442695
      %v333 = vpow.pop %v332
      %v334 = vmul.f32 %v331, 1.442695
      %v335 = vpow.pop %v334
      %v336 = vmul.f32 %v326, %v333
      %v337 = vmul.f32 %v327, %v335
      %v338 = vsub.f32 1.0, %v336
      %v339 = vsub.f32 1.0, %v337
      %vm340 = vcmp.lt.f32.partialorder %v300, 0.0
      %vm341 = vcmp.lt.f32.partialorder %v301, 0.0
      %v342 = vsub.f32 0.0, %v338
      %v343 = vsub.f32 0.0, %v339
      %v344 = vsel %vm340, %v342, %v338
      %v345 = vsel %vm341, %v343, %v339
      %v346 = vmul.f32 %v294, 0.5
      %v347 = vmul.f32 %v296, 0.5
      %v348 = vadd.f32 %v344, 1.0
      %v349 = vadd.f32 %v345, 1.0
      %v350 = vmul.f32 %v346, %v348
      %v351 = vmul.f32 %v347, %v349
      %v354 = vcombine.low %v350, %v351
      %356 = vst [vmem:[%s208] sm:$0xff] %v354
      %s357 = smul.u32 2, %s19
      %p358 = scmp.lt.s32.totalorder %s18, 1
      %s359 = scalar_select %p358, %s18, 1
      %p360 = scmp.lt.s32.totalorder %s357, 1
      %s361 = scalar_select %p360, %s357, 1
      %s362 = smul.addr %s359, 2
      %s363 = sadd.s32 %s361, %s362
      %s364 = smul.addr %s363, 4
      %s365 = scalar_lea.vmem %s3, %s364
      // Predicated region
      $region33: #{global_context_extractor_forward.2} parent=31 // pred_check
        %p366 = pneg %p116
      $region34: #{global_context_extractor_forward.2} parent=31 // pred_check_branch
        %368 = sbr.rel (%p366) target = $region36
      $region35: #{global_context_extractor_forward.2} parent=31 // pred_region
        %s369 = smul.u32 2, %s19
      $region36: #{global_context_extractor_forward.2} parent=31 // pred_fallthru
        _
    $region32: #{global_context_extractor_forward.2} parent=5 // pred_fallthru
      _
    %p370 = scmp.le.s32.totalorder 2, %s9
    // Predicated region
    $region37: #{global_context_extractor_forward.2} parent=5 // pred_check
      %p371 = pneg %p370
    $region38: #{global_context_extractor_forward.2} parent=5 // pred_check_branch
      %373 = sbr.rel (%p371) target = $region40
    $region39: #{global_context_extractor_forward.2} parent=5 // pred_region
      %s374 = ssub.s32 %s9, 2
      // Predicated region
      $region41: #{global_context_extractor_forward.2} parent=39 // pred_check
        %p375 = pneg %p122
      $region42: #{global_context_extractor_forward.2} parent=39 // pred_check_branch
        %377 = sbr.rel (%p375) target = $region44
      $region43: #{global_context_extractor_forward.2} parent=39 // pred_region
        %s378 = smul.u32 2, %s21
        %p379 = scmp.lt.s32.totalorder %s20, 1
        %s380 = scalar_select %p379, %s20, 1
        %p381 = scmp.lt.s32.totalorder %s378, 1
        %s382 = scalar_select %p381, %s378, 1
        %s383 = smul.addr %s380, 2
        %s384 = sadd.s32 %s382, %s383
        %s385 = smul.addr %s384, 4
        %s386 = scalar_lea.vmem %s3, %s385
      $region44: #{global_context_extractor_forward.2} parent=39 // pred_fallthru
        _
    $region40: #{global_context_extractor_forward.2} parent=5 // pred_fallthru
      _
  $region6: #{global_context_extractor_forward.2} parent=0 // loop_footer
    %s13 = sadd.s32 1, %s9
  $region7: #{global_context_extractor_forward.2} parent=0 // loop_footer_branch
    %8 = sbr.rel target = $region3
  $region8: #{global_context_extractor_forward.2} parent=0 // loop_exit
    _

// kernel: mul.39
$region0: #{mul.39}
  %s0 = inlined_call_operand.vmem [shape: f32[4,5,5], index: 0, kind: input, shape index: {}]
  %s1 = inlined_call_operand.vmem [shape: f32[4,25], index: 1, kind: output, shape index: {}]
  $region1: #{mul.39} parent=0
    #allocation0 [shape = 'u8[4096]{0}', space=vmem, size = 0x1000, scoped, tag = 'scoped mem for output reshape']
    %v2 = vld [vmem:[%s0] ss:$8 sm:$0xf]
    %vm3 = vcmask 39936
    %4 = vst.msk [vmem:[#allocation0] sm:$0xf] %vm3, %v2
    %s5 = scalar_lea.vmem %s0, 4
    %v6 = vld [vmem:[%s5] ss:$8 sm:$0xf]
    %7 = vrot.lane.b32.xlu0 %v6, 20
    %v8 = vpop.permute.xlu0 %7
    %vm9 = vcmask 203936
    %10 = vst.msk [vmem:[#allocation0] sm:$0xf] %vm9, %v8
    %s11 = scalar_lea.vmem %s0, 3
    %v12 = vld [vmem:[%s11] ss:$8 sm:$0xf]
    %13 = vrot.lane.b32.xlu0 %v12, 15
    %v14 = vpop.permute.xlu0 %13
    %vm15 = vcmask 162936
    %16 = vst.msk [vmem:[#allocation0] sm:$0xf] %vm15, %v14
    %s17 = scalar_lea.vmem %s0, 2
    %v18 = vld [vmem:[%s17] ss:$8 sm:$0xf]
    %19 = vrot.lane.b32.xlu0 %v18, 10
    %v20 = vpop.permute.xlu0 %19
    %vm21 = vcmask 121936
    %22 = vst.msk [vmem:[#allocation0] sm:$0xf] %vm21, %v20
    %s23 = scalar_lea.vmem %s0, 1
    %v24 = vld [vmem:[%s23] ss:$8 sm:$0xf]
    %25 = vrot.lane.b32.xlu0 %v24, 5
    %v26 = vpop.permute.xlu0 %25
    %vm27 = vcmask 80936
    %28 = vst.msk [vmem:[#allocation0] sm:$0xf] %vm27, %v26
    %s30 = sshll.u32 1, 4
    %s31 = ssub.s32 %s30, 1
    %v33 = vld [vmem:[#allocation0] sm:%s31]
    %s34 = sshll.u32 1, 4
    %s35 = ssub.s32 %s34, 1
    %36 = vst [vmem:[%s1] sm:%s35] %v33

// kernel: global_context_extractor_forward.3
$region0: #{global_context_extractor_forward.3}
  #allocation0 [shape = 'u32[]', space=smem, size = 0x4, offset = 0x4, fixed_abs, tag = 'smem constant byte address 0x4 - core index']
  #allocation1 [shape = 'u32[144,128]{1,0:T(1,128)}', space=vmem, size = 0x12000, scoped, tag = 'internal scratch']
  %s0 = inlined_call_operand.vmem [shape: bf16[2,36,25], index: 0, kind: input, shape index: {}]
  %s1 = inlined_call_operand.vmem [shape: bf16[4,36], index: 1, kind: input, shape index: {}]
  %s2 = inlined_call_operand.vmem [shape: f32[4,1], index: 2, kind: input, shape index: {}, may-alias: {2,4}]
  %s3 = inlined_call_operand.vmem [shape: f32[4,4,25], index: 3, kind: input, shape index: {}]
  %s4 = inlined_call_operand.vmem [shape: f32[4,1], index: 4, kind: input, shape index: {}, may-alias: {2,4}]
  %s5 = inlined_call_operand.vmem [shape: f32[2,4,25], index: 5, kind: output, shape index: {0}]
  %s6 = inlined_call_operand.vmem [shape: f32[2,4,1], index: 6, kind: output, shape index: {1}]
  %7 = xla_tuple %s5, %s6
  %s8 = sld [smem:[#allocation0]]
  $region61: #{global_context_extractor_forward.3} parent=0
    _
  %s10 = ssub.s32 1, %s8
  %s11 = scalar_select 0, %s10, %s8
  loop: start=0, step=1, limit=4
  $region2: #{global_context_extractor_forward.3} parent=0 // loop_pre_header
    _
  $region3: #{global_context_extractor_forward.3} parent=0 // loop_header
    %s13 = sphi 0, %s17
    %p14 = scmp.ge.s32.totalorder %s13, 4
    %s23 = sphi 0, %s25
    %s26 = sphi 0, %s23
    %s27 = sphi 0, %s26
    %s43 = sphi 0, %s27
    %s47 = sphi 0, %s47
    %s49 = sphi 0, %s47
    %s50 = sphi 0, %s49
    %s64 = sphi 0, %s50
    %s68 = sphi 0, %s68
    %s70 = sphi 0, %s68
    %s71 = sphi 0, %s70
    %s85 = sphi 0, %s71
    %s89 = sphi 0, %s89
    %s91 = sphi 0, %s89
    %s92 = sphi 0, %s91
    %s106 = sphi 0, %s92
    %s110 = sphi 0, %s110
    %s112 = sphi 0, %s110
    %s113 = sphi 0, %s112
    %s127 = sphi 0, %s113
    %s133 = sphi 0, %s135
    %s136 = sphi 0, %s133
    %s137 = sphi 0, %s136
    %s153 = sphi 0, %s137
    %s159 = sphi 0, %s161
    %s162 = sphi 0, %s159
    %s163 = sphi 0, %s162
    %s179 = sphi 0, %s163
  $region4: #{global_context_extractor_forward.3} parent=0 // loop_header_branch
    %16 = sbr.rel (%p14) target = $region8
  $region5: #{global_context_extractor_forward.3} parent=0 // loop_body
    %s18 = ssub.s32 %s13, 1
    %s19 = ssub.s32 %s13, 2
    %s20 = sadd.s32 %s13, 1
    %s21 = ssub.s32 %s13, %s20
    %p22 = scmp.eq.s32.totalorder %s21, 0
    %s24 = sadd.s32 %s23, 1
    %s25 = scalar_select %p22, %s23, %s24
    %p28 = pneg %p22
    %p29 = scmp.eq.s32.totalorder %s13, 1
    %p30 = por %p28, %p29
    %p31 = scmp.ne.s32.totalorder %s23, %s26
    %p32 = scmp.eq.s32.totalorder %s13, 0
    %p33 = por %p31, %p32
    %p34 = scmp.ne.s32.totalorder %s23, %s26
    %p35 = scmp.eq.s32.totalorder %s18, 1
    %p36 = por %p34, %p35
    %p37 = scmp.ne.s32.totalorder %s26, %s27
    %p38 = scmp.eq.s32.totalorder %s18, 0
    %p39 = por %p37, %p38
    %p40 = scmp.ne.s32.totalorder %s26, %s27
    %p41 = scmp.eq.s32.totalorder %s19, 1
    %p42 = por %p40, %p41
    %p44 = scmp.ne.s32.totalorder %s27, %s43
    %p45 = scmp.eq.s32.totalorder %s19, 0
    %p46 = por %p44, %p45
    %s48 = sadd.s32 %s47, 1
    %p51 = scmp.eq.s32.totalorder %s13, 1
    %p52 = scmp.ne.s32.totalorder %s47, %s49
    %p53 = scmp.eq.s32.totalorder %s13, 0
    %p54 = por %p52, %p53
    %p55 = scmp.ne.s32.totalorder %s47, %s49
    %p56 = scmp.eq.s32.totalorder %s18, 1
    %p57 = por %p55, %p56
    %p58 = scmp.ne.s32.totalorder %s49, %s50
    %p59 = scmp.eq.s32.totalorder %s18, 0
    %p60 = por %p58, %p59
    %p61 = scmp.ne.s32.totalorder %s49, %s50
    %p62 = scmp.eq.s32.totalorder %s19, 1
    %p63 = por %p61, %p62
    %p65 = scmp.ne.s32.totalorder %s50, %s64
    %p66 = scmp.eq.s32.totalorder %s19, 0
    %p67 = por %p65, %p66
    %s69 = sadd.s32 %s68, 1
    %p72 = scmp.eq.s32.totalorder %s13, 1
    %p73 = scmp.ne.s32.totalorder %s68, %s70
    %p74 = scmp.eq.s32.totalorder %s13, 0
    %p75 = por %p73, %p74
    %p76 = scmp.ne.s32.totalorder %s68, %s70
    %p77 = scmp.eq.s32.totalorder %s18, 1
    %p78 = por %p76, %p77
    %p79 = scmp.ne.s32.totalorder %s70, %s71
    %p80 = scmp.eq.s32.totalorder %s18, 0
    %p81 = por %p79, %p80
    %p82 = scmp.ne.s32.totalorder %s70, %s71
    %p83 = scmp.eq.s32.totalorder %s19, 1
    %p84 = por %p82, %p83
    %p86 = scmp.ne.s32.totalorder %s71, %s85
    %p87 = scmp.eq.s32.totalorder %s19, 0
    %p88 = por %p86, %p87
    %s90 = sadd.s32 %s89, 1
    %p93 = scmp.eq.s32.totalorder %s13, 1
    %p94 = scmp.ne.s32.totalorder %s89, %s91
    %p95 = scmp.eq.s32.totalorder %s13, 0
    %p96 = por %p94, %p95
    %p97 = scmp.ne.s32.totalorder %s89, %s91
    %p98 = scmp.eq.s32.totalorder %s18, 1
    %p99 = por %p97, %p98
    %p100 = scmp.ne.s32.totalorder %s91, %s92
    %p101 = scmp.eq.s32.totalorder %s18, 0
    %p102 = por %p100, %p101
    %p103 = scmp.ne.s32.totalorder %s91, %s92
    %p104 = scmp.eq.s32.totalorder %s19, 1
    %p105 = por %p103, %p104
    %p107 = scmp.ne.s32.totalorder %s92, %s106
    %p108 = scmp.eq.s32.totalorder %s19, 0
    %p109 = por %p107, %p108
    %s111 = sadd.s32 %s110, 1
    %p114 = scmp.eq.s32.totalorder %s13, 1
    %p115 = scmp.ne.s32.totalorder %s110, %s112
    %p116 = scmp.eq.s32.totalorder %s13, 0
    %p117 = por %p115, %p116
    %p118 = scmp.ne.s32.totalorder %s110, %s112
    %p119 = scmp.eq.s32.totalorder %s18, 1
    %p120 = por %p118, %p119
    %p121 = scmp.ne.s32.totalorder %s112, %s113
    %p122 = scmp.eq.s32.totalorder %s18, 0
    %p123 = por %p121, %p122
    %p124 = scmp.ne.s32.totalorder %s112, %s113
    %p125 = scmp.eq.s32.totalorder %s19, 1
    %p126 = por %p124, %p125
    %p128 = scmp.ne.s32.totalorder %s113, %s127
    %p129 = scmp.eq.s32.totalorder %s19, 0
    %p130 = por %p128, %p129
    %s131 = ssub.s32 %s13, %s20
    %p132 = scmp.eq.s32.totalorder %s131, 0
    %s134 = sadd.s32 %s133, 1
    %s135 = scalar_select %p132, %s133, %s134
    %p138 = pneg %p132
    %p139 = scmp.eq.s32.totalorder %s13, 1
    %p140 = por %p138, %p139
    %p141 = scmp.ne.s32.totalorder %s133, %s136
    %p142 = scmp.eq.s32.totalorder %s13, 0
    %p143 = por %p141, %p142
    %p144 = scmp.ne.s32.totalorder %s133, %s136
    %p145 = scmp.eq.s32.totalorder %s18, 1
    %p146 = por %p144, %p145
    %p147 = scmp.ne.s32.totalorder %s136, %s137
    %p148 = scmp.eq.s32.totalorder %s18, 0
    %p149 = por %p147, %p148
    %p150 = scmp.ne.s32.totalorder %s136, %s137
    %p151 = scmp.eq.s32.totalorder %s19, 1
    %p152 = por %p150, %p151
    %p154 = scmp.ne.s32.totalorder %s137, %s153
    %p155 = scmp.eq.s32.totalorder %s19, 0
    %p156 = por %p154, %p155
    %s157 = ssub.s32 %s13, %s20
    %p158 = scmp.eq.s32.totalorder %s157, 0
    %s160 = sadd.s32 %s159, 1
    %s161 = scalar_select %p158, %s159, %s160
    %p164 = pneg %p158
    %p165 = scmp.eq.s32.totalorder %s13, 1
    %p166 = por %p164, %p165
    %p167 = scmp.ne.s32.totalorder %s159, %s162
    %p168 = scmp.eq.s32.totalorder %s13, 0
    %p169 = por %p167, %p168
    %p170 = scmp.ne.s32.totalorder %s159, %s162
    %p171 = scmp.eq.s32.totalorder %s18, 1
    %p172 = por %p170, %p171
    %p173 = scmp.ne.s32.totalorder %s162, %s163
    %p174 = scmp.eq.s32.totalorder %s18, 0
    %p175 = por %p173, %p174
    %p176 = scmp.ne.s32.totalorder %s162, %s163
    %p177 = scmp.eq.s32.totalorder %s19, 1
    %p178 = por %p176, %p177
    %p180 = scmp.ne.s32.totalorder %s163, %s179
    %p181 = scmp.eq.s32.totalorder %s19, 0
    %p182 = por %p180, %p181
    %p183 = scmp.le.s32.totalorder 1, %s13
    %p184 = scmp.lt.s32.totalorder %s13, 3
    %p185 = pnand %p183, %p184
    %p186 = pneg %p185
    // Predicated region
    $region9: #{global_context_extractor_forward.3} parent=5 // pred_check
      _
    $region10: #{global_context_extractor_forward.3} parent=5 // pred_check_branch
      %188 = sbr.rel (%p185) target = $region12
    $region11: #{global_context_extractor_forward.3} parent=5 // pred_region
      %s189 = ssub.s32 %s13, 1
      // Predicated region
      $region13: #{global_context_extractor_forward.3} parent=11 // pred_check
        %p190 = pneg %p60
      $region14: #{global_context_extractor_forward.3} parent=11 // pred_check_branch
        %192 = sbr.rel (%p190) target = $region16
      $region15: #{global_context_extractor_forward.3} parent=11 // pred_region
        _
      $region16: #{global_context_extractor_forward.3} parent=11 // pred_fallthru
        _
      // Predicated region
      $region17: #{global_context_extractor_forward.3} parent=11 // pred_check
        %p193 = pneg %p81
      $region18: #{global_context_extractor_forward.3} parent=11 // pred_check_branch
        %195 = sbr.rel (%p193) target = $region20
      $region19: #{global_context_extractor_forward.3} parent=11 // pred_region
        _
      $region20: #{global_context_extractor_forward.3} parent=11 // pred_fallthru
        _
      // Predicated region
      $region21: #{global_context_extractor_forward.3} parent=11 // pred_check
        %p196 = pneg %p102
      $region22: #{global_context_extractor_forward.3} parent=11 // pred_check_branch
        %198 = sbr.rel (%p196) target = $region24
      $region23: #{global_context_extractor_forward.3} parent=11 // pred_region
        _
      $region24: #{global_context_extractor_forward.3} parent=11 // pred_fallthru
        _
      // Predicated region
      $region25: #{global_context_extractor_forward.3} parent=11 // pred_check
        %p199 = pneg %p123
      $region26: #{global_context_extractor_forward.3} parent=11 // pred_check_branch
        %201 = sbr.rel (%p199) target = $region28
      $region27: #{global_context_extractor_forward.3} parent=11 // pred_region
        _
      $region28: #{global_context_extractor_forward.3} parent=11 // pred_fallthru
        _
    $region12: #{global_context_extractor_forward.3} parent=5 // pred_fallthru
      _
    %p202 = scmp.lt.s32.totalorder %s13, 2
    // Predicated region
    $region29: #{global_context_extractor_forward.3} parent=5 // pred_check
      %p203 = pneg %p202
    $region30: #{global_context_extractor_forward.3} parent=5 // pred_check_branch
      %205 = sbr.rel (%p203) target = $region32
    $region31: #{global_context_extractor_forward.3} parent=5 // pred_region
      // Predicated region
      $region33: #{global_context_extractor_forward.3} parent=31 // pred_check
        %p206 = pneg %p33
      $region34: #{global_context_extractor_forward.3} parent=31 // pred_check_branch
        %208 = sbr.rel (%p206) target = $region36
      $region35: #{global_context_extractor_forward.3} parent=31 // pred_region
        %p209 = scmp.lt.s32.totalorder %s13, 1
        %s210 = scalar_select %p209, %s13, 1
        %s211 = smul.addr %s210, 5
        %s212 = smul.addr %s211, 4
        %s213 = scalar_lea.vmem %s0, %s212
      $region36: #{global_context_extractor_forward.3} parent=31 // pred_fallthru
        _
    $region32: #{global_context_extractor_forward.3} parent=5 // pred_fallthru
      _
    %p214 = scmp.le.s32.totalorder 1, %s13
    %p215 = scmp.lt.s32.totalorder %s13, 3
    %p216 = pnand %p214, %p215
    %p217 = pneg %p216
    // Predicated region
    $region37: #{global_context_extractor_forward.3} parent=5 // pred_check
      _
    $region38: #{global_context_extractor_forward.3} parent=5 // pred_check_branch
      %219 = sbr.rel (%p216) target = $region40
    $region39: #{global_context_extractor_forward.3} parent=5 // pred_region
      %s220 = ssub.s32 %s13, 1
      %p221 = scmp.lt.s32.totalorder %s18, 1
      %s222 = scalar_select %p221, %s18, 1
      %s223 = smul.addr %s222, 5
      %s224 = smul.addr %s223, 4
      %s225 = scalar_lea.vmem %s0, %s224
      %p226 = pneg %p39
      %p227 = pneg %p36
      %p228 = pneg %p60
      %p229 = pneg %p57
      %p230 = pneg %p81
      %p231 = pneg %p78
      %p232 = pneg %p102
      %p233 = pneg %p99
      %p234 = pneg %p123
      %p235 = pneg %p120
      %p236 = pneg %p149
      %p237 = pneg %p146
      %p238 = scmp.lt.s32.totalorder %s18, 1
      %s239 = scalar_select %p238, %s18, 1
      %s240 = smul.addr %s239, 4
      %s241 = scalar_lea.vmem %s5, %s240
      %p242 = pneg %p175
      %p243 = pneg %p172
      %p244 = scmp.lt.s32.totalorder %s18, 1
      %s245 = scalar_select %p244, %s18, 1
      %s246 = smul.addr %s245, 4
      %s247 = scalar_lea.vmem %s6, %s246
      %p248 = scmp.lt.s32.totalorder %s18, 1
      %s249 = scalar_select %p248, %s18, 1
      %s250 = smul.addr %s249, 5
      %s251 = smul.addr %s250, 4
      %s252 = scalar_lea.vmem %s0, %s251
      %p253 = scmp.lt.s32.totalorder %s18, 1
      %s254 = scalar_select %p253, %s18, 1
      %s255 = smul.addr %s254, 4
      %s256 = scalar_lea.vmem %s5, %s255
      %p257 = scmp.lt.s32.totalorder %s18, 1
      %s258 = scalar_select %p257, %s18, 1
      %s259 = smul.addr %s258, 4
      %s260 = scalar_lea.vmem %s6, %s259
      %v262 = vld [vmem:[%s1] sm:$0x3]
      %v263 = vld [vmem:[%s252] sm:$0xf]
      %v264 = vld [vmem:[%s252 + $0x4] sm:$0xf]
      %v265 = vld [vmem:[%s252 + $0x8] sm:$0xf]
      %v266 = vld [vmem:[%s252 + $0xc] sm:$0xf]
      %v267 = vld [vmem:[%s252 + $0x10] sm:$0x3]
      %v268 = vld [vmem:[%s2] sm:$0xf]
      %270 = vset.pattern.permute.xlu0 0
      %271 = vperm.xlu0 %270, %v268
      %v272 = vpop.permute.xlu0 %271
      %v279 = vunpack.c.l.b16 %v263
      %v280 = vunpack.c.l.b16 %v264
      %v281 = vunpack.c.l.b16 %v265
      %v282 = vunpack.c.l.b16 %v266
      %v283 = vunpack.c.l.b16 %v267
      %v284 = vpack.c.b16 %v280, %v279
      %v285 = vpack.c.b16 %v282, %v281
      %v286 = vpack.c.b16 %v283, %v283
      %vm289 = vcmask 293888
      %v291 = vsel %vm289, %v262, 0
      %vm293 = vcmask 1041408
      %v295 = vsel %vm293, %v286, 0
      %297 = vmatprep.subr.bf16.mxu0 0
      %298 = vmatpush1.bf16.msra.mxu0 0
      %299 = vmatprep.subr.bf16.mxu0 0
      %300 = vmatpush1.bf16.msra.mxu0 0
      %301 = vmatprep.subr.bf16.mxu0 0
      %302 = vmatpush1.bf16.msra.mxu0 0
      %303 = vmatprep.subr.bf16.mxu0 0
      %304 = vmatpush1.bf16.msra.mxu0 0
      %305 = vmatprep.subr.bf16.mxu0 0
      %306 = vmatpush1.bf16.msra.mxu0 0
      %307 = vmatprep.subr.bf16.mxu0 0
      %308 = vmatpush1.bf16.msra.mxu0 %v295
      %309 = vmatprep.subr.bf16.mxu0 0
      %310 = vmatpush1.bf16.msra.mxu0 %v285
      %311 = vmatprep.subr.bf16.mxu0 0
      %312 = vmatpush1.bf16.msra.mxu0 %v284
      %313 = vmatprep.subr.bf16.mxu0 0
      %314 = vmatpush2.bf16.msra.mxu0 0
      %315 = vmatprep.subr.bf16.mxu0 0
      %316 = vmatpush2.bf16.msra.mxu0 0
      %317 = vmatprep.subr.bf16.mxu0 0
      %318 = vmatpush2.bf16.msra.mxu0 0
      %319 = vmatprep.subr.bf16.mxu0 0
      %320 = vmatpush2.bf16.msra.mxu0 0
      %321 = vmatprep.subr.bf16.mxu0 0
      %322 = vmatpush2.bf16.msra.mxu0 0
      %323 = vmatprep.subr.bf16.mxu0 0
      %324 = vmatpush2.bf16.msra.mxu0 0
      %325 = vmatprep.subr.bf16.mxu0 0
      %326 = vmatpush2.bf16.msra.mxu0 0
      %327 = vmatprep.subr.bf16.mxu0 0
      %328 = vmatpush2.bf16.msra.mxu0 0
      %329 = vmatprep.mubr.bf16.mxu0 0
      %330 = vmatmul.mubr.bf16.gmra.mxu0 %v291
      %v331 = vpop.f32.mrf.mxu0
      %v332 = vadd.f32 %v272, %v331
      %v333 = vpop.f32.mrf.mxu0
      %v334 = vpop.f32.mrf.mxu0
      %v335 = vpop.f32.mrf.mxu0
      %336 = vdwg.mxu0
      %v337 = vmul.f32 %v332, 0.70710677
      %v338 = vand.u32 2147483647, %v337
      %v339 = vmul.f32 %v338, 0.3275911
      %v340 = vadd.f32 %v339, 1.0
      %v341 = vrcp.pop %v340
      %v342 = vmul.f32 %v341, 1.0614054
      %v343 = vadd.f32 %v342, -1.4531521
      %v344 = vmul.f32 %v341, %v343
      %v345 = vadd.f32 %v344, 1.4214138
      %v346 = vmul.f32 %v341, %v345
      %v347 = vadd.f32 %v346, -0.28449672
      %v348 = vmul.f32 %v341, %v347
      %v349 = vadd.f32 %v348, 0.2548296
      %v350 = vmul.f32 %v341, %v349
      %v351 = vsub.f32 0.0, %v338
      %v352 = vmul.f32 %v351, %v338
      %v353 = vmul.f32 %v352, 1.442695
      %v354 = vpow.pop %v353
      %v355 = vmul.f32 %v350, %v354
      %v356 = vsub.f32 1.0, %v355
      %vm357 = vcmp.lt.f32.partialorder %v337, 0.0
      %v358 = vsub.f32 0.0, %v356
      %v359 = vsel %vm357, %v358, %v356
      %v360 = vmul.f32 %v332, 0.5
      %v361 = vadd.f32 %v359, 1.0
      %v362 = vmul.f32 %v360, %v361
      %vm363 = vcmask 199680
      %364 = vst.msk [vmem:[%s256] sm:$0xf] %vm363, %v362
      %v365 = vld [vmem:[%s3] sm:$0xf]
      %v366 = vld [vmem:[%s3 + $0x4] sm:$0xf]
      %v367 = vld [vmem:[%s3 + $0x8] sm:$0xf]
      %v368 = vld [vmem:[%s3 + $0xc] sm:$0xf]
      %v369 = vmul.f32 %v365, %v362
      %v370 = vmul.f32 %v366, %v362
      %v371 = vmul.f32 %v367, %v362
      %v372 = vmul.f32 %v368, %v362
      %v373 = vsel %vm363, %v369, 0.0
      %374 = vadd.xlane.f32.xlu0 %v373
      %v375 = vpop.xlane.xlu0 %374
      %v376 = vsel %vm363, %v370, 0.0
      %377 = vadd.xlane.f32.xlu0 %v376
      %v378 = vpop.xlane.xlu0 %377
      %v379 = vsel %vm363, %v371, 0.0
      %380 = vadd.xlane.f32.xlu0 %v379
      %v381 = vpop.xlane.xlu0 %380
      %v382 = vsel %vm363, %v372, 0.0
      %383 = vadd.xlane.f32.xlu0 %v382
      %v384 = vpop.xlane.xlu0 %383
      %v389 = vlaneseq
      %v390 = vand.u32 %v389, 127
      %v391 = vlaneseq
      %v392 = vshrl.u32 %v391, 7
      %v393 = vsub.s32 %v390, %v392
      %v394 = vrot.slane %v375, %v393
      %v395 = vlaneseq
      %v396 = vshrl.u32 %v395, 7
      %v397 = vsub.s32 %v390, %v396
      %v398 = vrot.slane %v378, %v397
      %v399 = vlaneseq
      %v400 = vshrl.u32 %v399, 7
      %v401 = vsub.s32 %v390, %v400
      %v402 = vrot.slane %v381, %v401
      %v403 = vlaneseq
      %v404 = vshrl.u32 %v403, 7
      %v405 = vsub.s32 %v390, %v404
      %v406 = vrot.slane %v384, %v405
      %vm407 = vcmask 1041409
      %v408 = vsel %vm407, %v398, %v394
      %vm409 = vcmask 1042434
      %v410 = vsel %vm409, %v402, %v408
      %vm411 = vcmask 1043459
      %v412 = vsel %vm411, %v406, %v410
      %vm414 = vcmask 27648
      %v415 = vsel %vm414, %v412, 0.0
      %416 = vadd.xlane.f32.xlu0 %v415
      %v417 = vpop.xlane.xlu0 %416
      %v418 = vld [vmem:[%s4] sm:$0xf]
      %v419 = vadd.f32 %v417, %v418
      %v420 = vmul.f32 %v419, 0.70710677
      %v421 = vand.u32 2147483647, %v420
      %v422 = vmul.f32 %v421, 0.3275911
      %v423 = vadd.f32 %v422, 1.0
      %v424 = vrcp.pop %v423
      %v425 = vmul.f32 %v424, 1.0614054
      %v426 = vadd.f32 %v425, -1.4531521
      %v427 = vmul.f32 %v424, %v426
      %v428 = vadd.f32 %v427, 1.4214138
      %v429 = vmul.f32 %v424, %v428
      %v430 = vadd.f32 %v429, -0.28449672
      %v431 = vmul.f32 %v424, %v430
      %v432 = vadd.f32 %v431, 0.2548296
      %v433 = vmul.f32 %v424, %v432
      %v434 = vsub.f32 0.0, %v421
      %v435 = vmul.f32 %v434, %v421
      %v436 = vmul.f32 %v435, 1.442695
      %v437 = vpow.pop %v436
      %v438 = vmul.f32 %v433, %v437
      %v439 = vsub.f32 1.0, %v438
      %vm440 = vcmp.lt.f32.partialorder %v420, 0.0
      %v441 = vsub.f32 0.0, %v439
      %v442 = vsel %vm440, %v441, %v439
      %v443 = vmul.f32 %v419, 0.5
      %v444 = vadd.f32 %v442, 1.0
      %v445 = vmul.f32 %v443, %v444
      %vm446 = vcmask 3072
      %447 = vst.msk [vmem:[%s260] sm:$0xf] %vm446, %v445
      %p448 = scmp.lt.s32.totalorder %s18, 1
      %s449 = scalar_select %p448, %s18, 1
      %s450 = smul.addr %s449, 4
      %s451 = scalar_lea.vmem %s5, %s450
      %p452 = scmp.lt.s32.totalorder %s18, 1
      %s453 = scalar_select %p452, %s18, 1
      %s454 = smul.addr %s453, 4
      %s455 = scalar_lea.vmem %s6, %s454
      // Predicated region
      $region41: #{global_context_extractor_forward.3} parent=39 // pred_check
        %p456 = pneg %p146
      $region42: #{global_context_extractor_forward.3} parent=39 // pred_check_branch
        %458 = sbr.rel (%p456) target = $region44
      $region43: #{global_context_extractor_forward.3} parent=39 // pred_region
        _
      $region44: #{global_context_extractor_forward.3} parent=39 // pred_fallthru
        _
      // Predicated region
      $region45: #{global_context_extractor_forward.3} parent=39 // pred_check
        %p459 = pneg %p172
      $region46: #{global_context_extractor_forward.3} parent=39 // pred_check_branch
        %461 = sbr.rel (%p459) target = $region48
      $region47: #{global_context_extractor_forward.3} parent=39 // pred_region
        _
      $region48: #{global_context_extractor_forward.3} parent=39 // pred_fallthru
        _
    $region40: #{global_context_extractor_forward.3} parent=5 // pred_fallthru
      _
    %p462 = scmp.le.s32.totalorder 2, %s13
    // Predicated region
    $region49: #{global_context_extractor_forward.3} parent=5 // pred_check
      %p463 = pneg %p462
    $region50: #{global_context_extractor_forward.3} parent=5 // pred_check_branch
      %465 = sbr.rel (%p463) target = $region52
    $region51: #{global_context_extractor_forward.3} parent=5 // pred_region
      %s466 = ssub.s32 %s13, 2
      // Predicated region
      $region53: #{global_context_extractor_forward.3} parent=51 // pred_check
        %p467 = pneg %p152
      $region54: #{global_context_extractor_forward.3} parent=51 // pred_check_branch
        %469 = sbr.rel (%p467) target = $region56
      $region55: #{global_context_extractor_forward.3} parent=51 // pred_region
        %p470 = scmp.lt.s32.totalorder %s19, 1
        %s471 = scalar_select %p470, %s19, 1
        %s472 = smul.addr %s471, 4
        %s473 = scalar_lea.vmem %s5, %s472
      $region56: #{global_context_extractor_forward.3} parent=51 // pred_fallthru
        _
      // Predicated region
      $region57: #{global_context_extractor_forward.3} parent=51 // pred_check
        %p474 = pneg %p178
      $region58: #{global_context_extractor_forward.3} parent=51 // pred_check_branch
        %476 = sbr.rel (%p474) target = $region60
      $region59: #{global_context_extractor_forward.3} parent=51 // pred_region
        %p477 = scmp.lt.s32.totalorder %s19, 1
        %s478 = scalar_select %p477, %s19, 1
        %s479 = smul.addr %s478, 4
        %s480 = scalar_lea.vmem %s6, %s479
      $region60: #{global_context_extractor_forward.3} parent=51 // pred_fallthru
        _
    $region52: #{global_context_extractor_forward.3} parent=5 // pred_fallthru
      _
  $region6: #{global_context_extractor_forward.3} parent=0 // loop_footer
    %s17 = sadd.s32 1, %s13
  $region7: #{global_context_extractor_forward.3} parent=0 // loop_footer_branch
    %12 = sbr.rel target = $region3
  $region8: #{global_context_extractor_forward.3} parent=0 // loop_exit
    _

</llo_original>
